<compile_context>
chip_gen: v6e
topology: v6e:2x2x1
jax: 0.10.0
libtpu: 0.0.40
codegen_flags: <defaults>
</compile_context>

<pallas_src>
import math
import functools

import jax
import jax.numpy as jnp
from jax.experimental import pallas as pl
from jax.experimental.pallas import tpu as pltpu

LN_EPS = 1e-5          # LayerNorm eps for float32 inputs
L2NORM_EPS = 1e-12     # F.normalize default eps


def _layernorm(x, g):
    mean = jnp.mean(x, axis=-1, keepdims=True)
    var = jnp.mean((x - mean) ** 2, axis=-1, keepdims=True)   # unbiased=False
    return (x - mean) * jax.lax.rsqrt(var + LN_EPS) * g


def _l2norm(t):
    # matches F.normalize: t / max(||t||, eps)  ==  t * rsqrt(max(||t||^2, eps^2))
    sq = jnp.sum(t * t, axis=-1, keepdims=True)
    return t * jax.lax.rsqrt(jnp.maximum(sq, L2NORM_EPS * L2NORM_EPS))


def _attention_kernel(x_ref, g_in_ref, wq_ref, wkv_ref, nkv_ref, wout_ref,
                      g_out_ref, o_ref, out_scr,
                      *, heads, dim_head, scale, tq, mxu_dtype):
    # Grid: (batch, q_tiles). x_ref holds the full sequence of this batch element
    # (batch dim squeezed); o_ref / out_scr hold one q-tile.
    g_in = g_in_ref[...]                                   # (1, dim)

    # ---- K / V path (shared across heads): LayerNorm over the full sequence ----
    xn = _layernorm(x_ref[...], g_in)                      # (n, dim) f32
    kv = jnp.dot(xn.astype(mxu_dtype), wkv_ref[...].astype(mxu_dtype),
                 preferred_element_type=jnp.float32)       # (n, 2*dim_head)
    k = kv[:, :dim_head]                                   # (n, dim_head)
    v = kv[:, dim_head:].astype(mxu_dtype)                 # (n, dim_head)

    nkv = nkv_ref[...]                                     # (2, dim_head)
    nk = nkv[0:1, :]                                       # (1, dim_head) null key
    nv = nkv[1:2, :]                                       # (1, dim_head) null value

    # cosine-sim keys: l2norm once; fold the whole `scale` (= sqrt(scale) on q
    # times sqrt(scale) on k) into the keys so sim needs no extra multiply.
    k = (_l2norm(k) * scale).astype(mxu_dtype)
    nk = (_l2norm(nk) * scale).astype(mxu_dtype)

    # ---- Q path: only this q-tile's rows ----
    qi = pl.program_id(1)
    qstart = pl.multiple_of(qi * tq, tq)
    xq = _layernorm(x_ref[pl.ds(qstart, tq), :], g_in)     # (tq, dim)
    q_all = jnp.dot(xq.astype(mxu_dtype), wq_ref[...].astype(mxu_dtype),
                    preferred_element_type=jnp.float32)    # (tq, heads*dim_head)

    # Rearrange to head-major rows (heads*tq, dim_head) so the l2norm, sim,
    # softmax and P@V are each ONE batched op over all heads.
    # (The reference's `q = q * self.scale` before l2norm is a no-op -> omitted.)
    q2 = jnp.concatenate(
        [q_all[:, h * dim_head:(h + 1) * dim_head] for h in range(heads)], axis=0)
    q2 = _l2norm(q2).astype(mxu_dtype)                     # (heads*tq, dim_head)

    # sim over regular keys and over the null key (kept separate to avoid an
    # unaligned concat along the key axis); softmax in f32.
    sim_k = jax.lax.dot_general(q2, k, (((1,), (1,)), ((), ())),
                                preferred_element_type=jnp.float32)   # (heads*tq, n)
    sim_0 = jax.lax.dot_general(q2, nk, (((1,), (1,)), ((), ())),
                                preferred_element_type=jnp.float32)   # (heads*tq, 1)

    m = jnp.maximum(jnp.max(sim_k, axis=-1, keepdims=True), sim_0)
    p_k = jnp.exp(sim_k - m)
    p_0 = jnp.exp(sim_0 - m)
    denom = jnp.sum(p_k, axis=-1, keepdims=True) + p_0

    out2 = (jnp.dot(p_k.astype(mxu_dtype), v, preferred_element_type=jnp.float32)
            + p_0 * nv)                                     # (heads*tq, dim_head) f32
    out2 = out2 * pl.reciprocal(denom, approx=True)

    # Reassemble (tq, heads*dim_head) via VMEM scratch (static lane-slice stores)
    # so the output projection is ONE (tq, inner) @ (inner, dim) matmul.
    for h in range(heads):
        out_scr[:, h * dim_head:(h + 1) * dim_head] = out2[h * tq:(h + 1) * tq, :]
    out = out_scr[...]                                      # (tq, inner)

    proj = jnp.dot(out.astype(mxu_dtype), wout_ref[...].astype(mxu_dtype),
                   preferred_element_type=jnp.float32)      # (tq, dim)

    # ---- final LayerNorm of to_out ----
    o_ref[...] = _layernorm(proj, g_out_ref[...]).astype(o_ref.dtype)


def attention_forward(x, params, *, heads, dim_head, scale, tq=None,
                      mxu_dtype=jnp.bfloat16):
    b, n, dim = x.shape
    inner = heads * dim_head

    if tq is None:
        if n <= 256:
            tq = n
        else:
            tq = next((t for t in (256, 128, 64, 32, 16, 8) if n % t == 0), n)
    assert n % tq == 0, "sequence length must be divisible by the q-tile size"
    n_q = n // tq

    g_in = params["g_in"].reshape(1, dim)
    g_out = params["g_out"].reshape(1, dim)

    kernel = functools.partial(_attention_kernel, heads=heads, dim_head=dim_head,
                               scale=float(scale), tq=tq, mxu_dtype=mxu_dtype)

    return pl.pallas_call(
        kernel,
        out_shape=jax.ShapeDtypeStruct((b, n, dim), x.dtype),
        grid_spec=pltpu.PrefetchScalarGridSpec(
            num_scalar_prefetch=0,
            grid=(b, n_q),
            in_specs=[
                pl.BlockSpec((None, n, dim), lambda bi, qi: (bi, 0, 0)),      # x (full seq, batch squeezed)
                pl.BlockSpec((1, dim), lambda bi, qi: (0, 0)),                # g_in
                pl.BlockSpec((dim, inner), lambda bi, qi: (0, 0)),            # Wq
                pl.BlockSpec((dim, 2 * dim_head), lambda bi, qi: (0, 0)),     # Wkv
                pl.BlockSpec((2, dim_head), lambda bi, qi: (0, 0)),           # null_kv
                pl.BlockSpec((inner, dim), lambda bi, qi: (0, 0)),            # Wout
                pl.BlockSpec((1, dim), lambda bi, qi: (0, 0)),                # g_out
            ],
            out_specs=pl.BlockSpec((None, tq, dim), lambda bi, qi: (bi, qi, 0)),
            scratch_shapes=[pltpu.VMEM((tq, inner), jnp.float32)],
        ),
        compiler_params=pltpu.CompilerParams(
            dimension_semantics=("parallel", "parallel"),   # shard (b, q-tiles) across cores
            vmem_limit_bytes=48 * 1024 * 1024,              # safe on v7x's 64 MiB VMEM
        ),
    )(x, g_in, params["wq"], params["wkv"], params["null_kv"], params["wout"], g_out)


# ---------------- pure-JAX reference (mirrors the torch forward) ----------------
def attention_reference(x, params, *, heads, dim_head, scale):
    b, n, dim = x.shape
    hp = dict(precision=jax.lax.Precision.HIGHEST)

    def ln(t, g):
        mu = jnp.mean(t, -1, keepdims=True)
        var = jnp.mean((t - mu) ** 2, -1, keepdims=True)
        return (t - mu) * jax.lax.rsqrt(var + LN_EPS) * g

    def l2n(t):
        return t / jnp.maximum(jnp.linalg.norm(t, axis=-1, keepdims=True), L2NORM_EPS)

    xn = ln(x, params["g_in"])
    q = jnp.einsum("bnd,de->bne", xn, params["wq"], **hp)
    kv = jnp.einsum("bnd,de->bne", xn, params["wkv"], **hp)
    k, v = kv[..., :dim_head], kv[..., dim_head:]
    q = q.reshape(b, n, heads, dim_head).transpose(0, 2, 1, 3) * scale      # b h n d
    nk = jnp.broadcast_to(params["null_kv"][0], (b, 1, dim_head))
    nv = jnp.broadcast_to(params["null_kv"][1], (b, 1, dim_head))
    k = jnp.concatenate([nk, k], axis=1)
    v = jnp.concatenate([nv, v], axis=1)
    q, k = l2n(q) * math.sqrt(scale), l2n(k) * math.sqrt(scale)
    sim = jnp.einsum("bhid,bjd->bhij", q, k, **hp)
    attn = jax.nn.softmax(sim.astype(jnp.float32), axis=-1)
    out = jnp.einsum("bhij,bjd->bhid", attn, v, **hp)
    out = out.transpose(0, 2, 1, 3).reshape(b, n, heads * dim_head)
    out = jnp.einsum("bne,ed->bnd", out, params["wout"], **hp)
    return ln(out, params["g_out"])


if __name__ == "__main__":
    # Small shapes consistent with the module's forward: x is (b, n, dim).
    # n=16 with tq=8 exercises the 2-tile q grid path.
    b, n, dim = 2, 16, 32
    heads, dim_head = 4, 16
    scale = 16.0  # cosine_sim_scale (cosine_sim=True default)
    inner = heads * dim_head

    key = jax.random.PRNGKey(0)
    k0, k1, k2, k3, k4 = jax.random.split(key, 5)

    x = jax.random.normal(k0, (b, n, dim), dtype=jnp.float32)
    params = dict(
        g_in=jnp.ones((dim,), jnp.float32),                                  # LayerNorm gain (init ones)
        g_out=jnp.ones((dim,), jnp.float32),                                 # to_out LayerNorm gain
        wq=jax.random.normal(k1, (dim, inner), jnp.float32) * 0.08,          # to_q (transposed layout)
        wkv=jax.random.normal(k2, (dim, 2 * dim_head), jnp.float32) * 0.08,  # to_kv (transposed layout)
        null_kv=jax.random.normal(k3, (2, dim_head), jnp.float32),           # null key / value
        wout=jax.random.normal(k4, (inner, dim), jnp.float32) * 0.08,        # to_out linear (transposed)
    )

    ref = attention_reference(x, params, heads=heads, dim_head=dim_head, scale=scale)

    # 1) f32-MXU run: tight structural/numerical check (2 q-tiles per batch element).
    out_f32 = attention_forward(x, params, heads=heads, dim_head=dim_head,
                                scale=scale, tq=8, mxu_dtype=jnp.float32)
    out_f32 = jax.block_until_ready(out_f32)
    assert out_f32.shape == (b, n, dim)
    err_f32 = float(jnp.max(jnp.abs(out_f32 - ref)))
    assert err_f32 < 2e-2, f"f32 max abs error {err_f32}"

    # 2) default bf16-MXU run (performance configuration): looser tolerance vs f32 ref.
    out_bf16 = attention_forward(x, params, heads=heads, dim_head=dim_head,
                                 scale=scale, tq=8)
    out_bf16 = jax.block_until_ready(out_bf16)
    err_bf16 = float(jnp.max(jnp.abs(out_bf16 - ref)))
    assert err_bf16 < 8e-2, f"bf16 max abs error {err_bf16}"

    print("KERNEL_OK")
</pallas_src>

<mosaic_0001>
module attributes {stable_mosaic.version = 11 : i64} {
  func.func @_attention_kernel(%arg0: i32, %arg1: i32, %arg2: memref<1x16x32xf32, #tpu.memory_space<vmem>>, %arg3: memref<1x32xf32, #tpu.memory_space<vmem>>, %arg4: memref<32x64xf32, #tpu.memory_space<vmem>>, %arg5: memref<32x32xf32, #tpu.memory_space<vmem>>, %arg6: memref<2x16xf32, #tpu.memory_space<vmem>>, %arg7: memref<64x32xf32, #tpu.memory_space<vmem>>, %arg8: memref<1x32xf32, #tpu.memory_space<vmem>>, %arg9: memref<1x8x32xf32, #tpu.memory_space<vmem>>, %arg10: memref<8x64xf32, #tpu.memory_space<vmem>>) attributes {dimension_semantics = [#tpu.dimension_semantics<parallel>, #tpu.dimension_semantics<parallel>], iteration_bounds = array<i64: 2, 2>, scalar_prefetch = 0 : i64, scratch_operands = 1 : i64, tpu.core_type = #tpu.core_type<tc>, window_params = [{transform_indices = @transform_0, window_bounds = array<i64: 1, 16, 32>}, {pipeline_mode = #tpu.pipeline_mode<synchronous>, transform_indices = @transform_1, window_bounds = array<i64: 1, 32>}, {pipeline_mode = #tpu.pipeline_mode<synchronous>, transform_indices = @transform_2, window_bounds = array<i64: 32, 64>}, {pipeline_mode = #tpu.pipeline_mode<synchronous>, transform_indices = @transform_3, window_bounds = array<i64: 32, 32>}, {pipeline_mode = #tpu.pipeline_mode<synchronous>, transform_indices = @transform_4, window_bounds = array<i64: 2, 16>}, {pipeline_mode = #tpu.pipeline_mode<synchronous>, transform_indices = @transform_5, window_bounds = array<i64: 64, 32>}, {pipeline_mode = #tpu.pipeline_mode<synchronous>, transform_indices = @transform_6, window_bounds = array<i64: 1, 32>}, {transform_indices = @transform_7, window_bounds = array<i64: 1, 8, 32>}]} {
    %c0 = arith.constant 0 : index
    %c0_0 = arith.constant 0 : index
    %0 = vector.load %arg3[%c0, %c0_0] : memref<1x32xf32, #tpu.memory_space<vmem>>, vector<1x32xf32>
    %c0_1 = arith.constant 0 : index
    %c0_2 = arith.constant 0 : index
    %c0_3 = arith.constant 0 : index
    %1 = vector.load %arg2[%c0_1, %c0_2, %c0_3] : memref<1x16x32xf32, #tpu.memory_space<vmem>>, vector<1x16x32xf32>
    %2 = vector.shape_cast %1 : vector<1x16x32xf32> to vector<16x32xf32>
    %cst = arith.constant dense<0.000000e+00> : vector<16xf32>
    %3 = vector.multi_reduction <add>, %2, %cst [1] : vector<16x32xf32> to vector<16xf32>
    %4 = vector.shape_cast %3 : vector<16xf32> to vector<16x1xf32>
    %cst_4 = arith.constant 3.200000e+01 : f32
    %5 = vector.broadcast %cst_4 : f32 to vector<16x1xf32>
    %6 = arith.divf %4, %5 : vector<16x1xf32>
    %7 = vector.broadcast %6 : vector<16x1xf32> to vector<16x32xf32>
    %8 = arith.subf %2, %7 : vector<16x32xf32>
    %9 = arith.mulf %8, %8 : vector<16x32xf32>
    %cst_5 = arith.constant dense<0.000000e+00> : vector<16xf32>
    %10 = vector.multi_reduction <add>, %9, %cst_5 [1] : vector<16x32xf32> to vector<16xf32>
    %11 = vector.shape_cast %10 : vector<16xf32> to vector<16x1xf32>
    %cst_6 = arith.constant 3.200000e+01 : f32
    %12 = vector.broadcast %cst_6 : f32 to vector<16x1xf32>
    %13 = arith.divf %11, %12 : vector<16x1xf32>
    %14 = vector.broadcast %6 : vector<16x1xf32> to vector<16x32xf32>
    %15 = arith.subf %2, %14 : vector<16x32xf32>
    %cst_7 = arith.constant 9.99999974E-6 : f32
    %16 = vector.broadcast %cst_7 : f32 to vector<16x1xf32>
    %17 = arith.addf %13, %16 : vector<16x1xf32>
    %18 = math.rsqrt %17 : vector<16x1xf32>
    %19 = vector.broadcast %18 : vector<16x1xf32> to vector<16x32xf32>
    %20 = arith.mulf %15, %19 : vector<16x32xf32>
    %21 = vector.broadcast %0 : vector<1x32xf32> to vector<16x32xf32>
    %22 = arith.mulf %20, %21 : vector<16x32xf32>
    %c0_8 = arith.constant 0 : index
    %c0_9 = arith.constant 0 : index
    %23 = vector.load %arg5[%c0_8, %c0_9] : memref<32x32xf32, #tpu.memory_space<vmem>>, vector<32x32xf32>
    %cst_10 = arith.constant dense<0.000000e+00> : vector<16x32xf32>
    %24 = tpu.matmul %22, %23, %cst_10 {dimension_numbers = #tpu.dot_dimension_numbers<[1], [0], [0], [1], [0, 0, 1, 1], [], []>} : vector<16x32xf32>, vector<32x32xf32>, vector<16x32xf32> -> vector<16x32xf32>
    %25 = vector.extract_strided_slice %24 {offsets = [0, 0], sizes = [16, 16], strides = [1, 1]} : vector<16x32xf32> to vector<16x16xf32>
    %26 = vector.extract_strided_slice %24 {offsets = [0, 16], sizes = [16, 16], strides = [1, 1]} : vector<16x32xf32> to vector<16x16xf32>
    %c0_11 = arith.constant 0 : index
    %c0_12 = arith.constant 0 : index
    %27 = vector.load %arg6[%c0_11, %c0_12] : memref<2x16xf32, #tpu.memory_space<vmem>>, vector<2x16xf32>
    %28 = vector.extract_strided_slice %27 {offsets = [0, 0], sizes = [1, 16], strides = [1, 1]} : vector<2x16xf32> to vector<1x16xf32>
    %29 = vector.extract_strided_slice %27 {offsets = [1, 0], sizes = [1, 16], strides = [1, 1]} : vector<2x16xf32> to vector<1x16xf32>
    %30 = arith.mulf %25, %25 : vector<16x16xf32>
    %cst_13 = arith.constant dense<0.000000e+00> : vector<16xf32>
    %31 = vector.multi_reduction <add>, %30, %cst_13 [1] : vector<16x16xf32> to vector<16xf32>
    %32 = vector.shape_cast %31 : vector<16xf32> to vector<16x1xf32>
    %cst_14 = arith.constant 1.000000e-24 : f32
    %33 = vector.broadcast %cst_14 : f32 to vector<16x1xf32>
    %34 = arith.maximumf %32, %33 : vector<16x1xf32>
    %35 = math.rsqrt %34 : vector<16x1xf32>
    %36 = vector.broadcast %35 : vector<16x1xf32> to vector<16x16xf32>
    %37 = arith.mulf %25, %36 : vector<16x16xf32>
    %cst_15 = arith.constant 1.600000e+01 : f32
    %38 = vector.broadcast %cst_15 : f32 to vector<16x16xf32>
    %39 = arith.mulf %37, %38 : vector<16x16xf32>
    %40 = arith.mulf %28, %28 : vector<1x16xf32>
    %cst_16 = arith.constant dense<0.000000e+00> : vector<1xf32>
    %41 = vector.multi_reduction <add>, %40, %cst_16 [1] : vector<1x16xf32> to vector<1xf32>
    %42 = vector.shape_cast %41 : vector<1xf32> to vector<1x1xf32>
    %cst_17 = arith.constant 1.000000e-24 : f32
    %43 = vector.broadcast %cst_17 : f32 to vector<1x1xf32>
    %44 = arith.maximumf %42, %43 : vector<1x1xf32>
    %45 = math.rsqrt %44 : vector<1x1xf32>
    %46 = vector.broadcast %45 : vector<1x1xf32> to vector<1x16xf32>
    %47 = arith.mulf %28, %46 : vector<1x16xf32>
    %cst_18 = arith.constant 1.600000e+01 : f32
    %48 = vector.broadcast %cst_18 : f32 to vector<1x16xf32>
    %49 = arith.mulf %47, %48 : vector<1x16xf32>
    %c8_i32 = arith.constant 8 : i32
    %50 = arith.muli %arg1, %c8_i32 : i32
    %51 = tpu.assume_multiple %50, 8 : i32
    %c0_19 = arith.constant 0 : index
    %52 = arith.index_cast %51 : i32 to index
    %c0_20 = arith.constant 0 : index
    %53 = vector.load %arg2[%c0_19, %52, %c0_20] : memref<1x16x32xf32, #tpu.memory_space<vmem>>, vector<1x8x32xf32>
    %54 = vector.shape_cast %53 : vector<1x8x32xf32> to vector<8x32xf32>
    %cst_21 = arith.constant dense<0.000000e+00> : vector<8xf32>
    %55 = vector.multi_reduction <add>, %54, %cst_21 [1] : vector<8x32xf32> to vector<8xf32>
    %56 = vector.shape_cast %55 : vector<8xf32> to vector<8x1xf32>
    %cst_22 = arith.constant 3.200000e+01 : f32
    %57 = vector.broadcast %cst_22 : f32 to vector<8x1xf32>
    %58 = arith.divf %56, %57 : vector<8x1xf32>
    %59 = vector.broadcast %58 : vector<8x1xf32> to vector<8x32xf32>
    %60 = arith.subf %54, %59 : vector<8x32xf32>
    %61 = arith.mulf %60, %60 : vector<8x32xf32>
    %cst_23 = arith.constant dense<0.000000e+00> : vector<8xf32>
    %62 = vector.multi_reduction <add>, %61, %cst_23 [1] : vector<8x32xf32> to vector<8xf32>
    %63 = vector.shape_cast %62 : vector<8xf32> to vector<8x1xf32>
    %cst_24 = arith.constant 3.200000e+01 : f32
    %64 = vector.broadcast %cst_24 : f32 to vector<8x1xf32>
    %65 = arith.divf %63, %64 : vector<8x1xf32>
    %66 = vector.broadcast %58 : vector<8x1xf32> to vector<8x32xf32>
    %67 = arith.subf %54, %66 : vector<8x32xf32>
    %cst_25 = arith.constant 9.99999974E-6 : f32
    %68 = vector.broadcast %cst_25 : f32 to vector<8x1xf32>
    %69 = arith.addf %65, %68 : vector<8x1xf32>
    %70 = math.rsqrt %69 : vector<8x1xf32>
    %71 = vector.broadcast %70 : vector<8x1xf32> to vector<8x32xf32>
    %72 = arith.mulf %67, %71 : vector<8x32xf32>
    %73 = vector.broadcast %0 : vector<1x32xf32> to vector<8x32xf32>
    %74 = arith.mulf %72, %73 : vector<8x32xf32>
    %c0_26 = arith.constant 0 : index
    %c0_27 = arith.constant 0 : index
    %75 = vector.load %arg4[%c0_26, %c0_27] : memref<32x64xf32, #tpu.memory_space<vmem>>, vector<32x64xf32>
    %cst_28 = arith.constant dense<0.000000e+00> : vector<8x64xf32>
    %76 = tpu.matmul %74, %75, %cst_28 {dimension_numbers = #tpu.dot_dimension_numbers<[1], [0], [0], [1], [0, 0, 1, 1], [], []>} : vector<8x32xf32>, vector<32x64xf32>, vector<8x64xf32> -> vector<8x64xf32>
    %77 = vector.extract_strided_slice %76 {offsets = [0, 0], sizes = [8, 16], strides = [1, 1]} : vector<8x64xf32> to vector<8x16xf32>
    %78 = vector.extract_strided_slice %76 {offsets = [0, 16], sizes = [8, 16], strides = [1, 1]} : vector<8x64xf32> to vector<8x16xf32>
    %79 = vector.extract_strided_slice %76 {offsets = [0, 32], sizes = [8, 16], strides = [1, 1]} : vector<8x64xf32> to vector<8x16xf32>
    %80 = vector.extract_strided_slice %76 {offsets = [0, 48], sizes = [8, 16], strides = [1, 1]} : vector<8x64xf32> to vector<8x16xf32>
    %81 = tpu.concatenate %77, %78, %79, %80 in 0 : vector<8x16xf32>, vector<8x16xf32>, vector<8x16xf32>, vector<8x16xf32> -> vector<32x16xf32>
    %82 = arith.mulf %81, %81 : vector<32x16xf32>
    %cst_29 = arith.constant dense<0.000000e+00> : vector<32xf32>
    %83 = vector.multi_reduction <add>, %82, %cst_29 [1] : vector<32x16xf32> to vector<32xf32>
    %84 = vector.shape_cast %83 : vector<32xf32> to vector<32x1xf32>
    %cst_30 = arith.constant 1.000000e-24 : f32
    %85 = vector.broadcast %cst_30 : f32 to vector<32x1xf32>
    %86 = arith.maximumf %84, %85 : vector<32x1xf32>
    %87 = math.rsqrt %86 : vector<32x1xf32>
    %88 = vector.broadcast %87 : vector<32x1xf32> to vector<32x16xf32>
    %89 = arith.mulf %81, %88 : vector<32x16xf32>
    %cst_31 = arith.constant dense<0.000000e+00> : vector<32x16xf32>
    %90 = tpu.matmul %89, %39, %cst_31 {dimension_numbers = #tpu.dot_dimension_numbers<[1], [1], [0], [0], [0, 0, 1, 0], [], []>} : vector<32x16xf32>, vector<16x16xf32>, vector<32x16xf32> -> vector<32x16xf32>
    %cst_32 = arith.constant dense<0.000000e+00> : vector<32x1xf32>
    %91 = tpu.matmul %89, %49, %cst_32 {dimension_numbers = #tpu.dot_dimension_numbers<[1], [1], [0], [0], [0, 0, 1, 0], [], []>} : vector<32x16xf32>, vector<1x16xf32>, vector<32x1xf32> -> vector<32x1xf32>
    %cst_33 = arith.constant dense<0xFF800000> : vector<32xf32>
    %92 = vector.multi_reduction <maximumf>, %90, %cst_33 [1] : vector<32x16xf32> to vector<32xf32>
    %93 = vector.shape_cast %92 : vector<32xf32> to vector<32x1xf32>
    %94 = arith.maximumf %93, %91 : vector<32x1xf32>
    %95 = vector.broadcast %94 : vector<32x1xf32> to vector<32x16xf32>
    %96 = arith.subf %90, %95 : vector<32x16xf32>
    %97 = math.exp %96 : vector<32x16xf32>
    %98 = arith.subf %91, %94 : vector<32x1xf32>
    %99 = math.exp %98 : vector<32x1xf32>
    %cst_34 = arith.constant dense<0.000000e+00> : vector<32xf32>
    %100 = vector.multi_reduction <add>, %97, %cst_34 [1] : vector<32x16xf32> to vector<32xf32>
    %101 = vector.shape_cast %100 : vector<32xf32> to vector<32x1xf32>
    %102 = arith.addf %101, %99 : vector<32x1xf32>
    %cst_35 = arith.constant dense<0.000000e+00> : vector<32x16xf32>
    %103 = tpu.matmul %97, %26, %cst_35 {dimension_numbers = #tpu.dot_dimension_numbers<[1], [0], [0], [1], [0, 0, 1, 1], [], []>} : vector<32x16xf32>, vector<16x16xf32>, vector<32x16xf32> -> vector<32x16xf32>
    %104 = vector.broadcast %99 : vector<32x1xf32> to vector<32x16xf32>
    %105 = vector.broadcast %29 : vector<1x16xf32> to vector<32x16xf32>
    %106 = arith.mulf %104, %105 : vector<32x16xf32>
    %107 = arith.addf %103, %106 : vector<32x16xf32>
    %108 = tpu.reciprocal %102 {approx = true} : vector<32x1xf32> -> vector<32x1xf32>
    %109 = vector.broadcast %108 : vector<32x1xf32> to vector<32x16xf32>
    %110 = arith.mulf %107, %109 : vector<32x16xf32>
    %111 = vector.extract_strided_slice %110 {offsets = [0, 0], sizes = [8, 16], strides = [1, 1]} : vector<32x16xf32> to vector<8x16xf32>
    %c0_36 = arith.constant 0 : index
    %c0_37 = arith.constant 0 : index
    %112 = vector.load %arg10[%c0_36, %c0_37] : memref<8x64xf32, #tpu.memory_space<vmem>>, vector<8x16xf32>
    tpu.vector_store %arg10[%c0_36, %c0_37], %111 {strides = array<i32>} : memref<8x64xf32, #tpu.memory_space<vmem>>, vector<8x16xf32>,
    %113 = vector.extract_strided_slice %110 {offsets = [8, 0], sizes = [8, 16], strides = [1, 1]} : vector<32x16xf32> to vector<8x16xf32>
    %c0_38 = arith.constant 0 : index
    %c16 = arith.constant 16 : index
    %114 = vector.load %arg10[%c0_38, %c16] : memref<8x64xf32, #tpu.memory_space<vmem>>, vector<8x16xf32>
    tpu.vector_store %arg10[%c0_38, %c16], %113 {strides = array<i32>} : memref<8x64xf32, #tpu.memory_space<vmem>>, vector<8x16xf32>,
    %115 = vector.extract_strided_slice %110 {offsets = [16, 0], sizes = [8, 16], strides = [1, 1]} : vector<32x16xf32> to vector<8x16xf32>
    %c0_39 = arith.constant 0 : index
    %c32 = arith.constant 32 : index
    %116 = vector.load %arg10[%c0_39, %c32] : memref<8x64xf32, #tpu.memory_space<vmem>>, vector<8x16xf32>
    tpu.vector_store %arg10[%c0_39, %c32], %115 {strides = array<i32>} : memref<8x64xf32, #tpu.memory_space<vmem>>, vector<8x16xf32>,
    %117 = vector.extract_strided_slice %110 {offsets = [24, 0], sizes = [8, 16], strides = [1, 1]} : vector<32x16xf32> to vector<8x16xf32>
    %c0_40 = arith.constant 0 : index
    %c48 = arith.constant 48 : index
    %118 = vector.load %arg10[%c0_40, %c48] : memref<8x64xf32, #tpu.memory_space<vmem>>, vector<8x16xf32>
    tpu.vector_store %arg10[%c0_40, %c48], %117 {strides = array<i32>} : memref<8x64xf32, #tpu.memory_space<vmem>>, vector<8x16xf32>,
    %c0_41 = arith.constant 0 : index
    %c0_42 = arith.constant 0 : index
    %119 = vector.load %arg10[%c0_41, %c0_42] : memref<8x64xf32, #tpu.memory_space<vmem>>, vector<8x64xf32>
    %c0_43 = arith.constant 0 : index
    %c0_44 = arith.constant 0 : index
    %120 = vector.load %arg7[%c0_43, %c0_44] : memref<64x32xf32, #tpu.memory_space<vmem>>, vector<64x32xf32>
    %cst_45 = arith.constant dense<0.000000e+00> : vector<8x32xf32>
    %121 = tpu.matmul %119, %120, %cst_45 {dimension_numbers = #tpu.dot_dimension_numbers<[1], [0], [0], [1], [0, 0, 1, 1], [], []>} : vector<8x64xf32>, vector<64x32xf32>, vector<8x32xf32> -> vector<8x32xf32>
    %c0_46 = arith.constant 0 : index
    %c0_47 = arith.constant 0 : index
    %122 = vector.load %arg8[%c0_46, %c0_47] : memref<1x32xf32, #tpu.memory_space<vmem>>, vector<1x32xf32>
    %cst_48 = arith.constant dense<0.000000e+00> : vector<8xf32>
    %123 = vector.multi_reduction <add>, %121, %cst_48 [1] : vector<8x32xf32> to vector<8xf32>
    %124 = vector.shape_cast %123 : vector<8xf32> to vector<8x1xf32>
    %cst_49 = arith.constant 3.200000e+01 : f32
    %125 = vector.broadcast %cst_49 : f32 to vector<8x1xf32>
    %126 = arith.divf %124, %125 : vector<8x1xf32>
    %127 = vector.broadcast %126 : vector<8x1xf32> to vector<8x32xf32>
    %128 = arith.subf %121, %127 : vector<8x32xf32>
    %129 = arith.mulf %128, %128 : vector<8x32xf32>
    %cst_50 = arith.constant dense<0.000000e+00> : vector<8xf32>
    %130 = vector.multi_reduction <add>, %129, %cst_50 [1] : vector<8x32xf32> to vector<8xf32>
    %131 = vector.shape_cast %130 : vector<8xf32> to vector<8x1xf32>
    %cst_51 = arith.constant 3.200000e+01 : f32
    %132 = vector.broadcast %cst_51 : f32 to vector<8x1xf32>
    %133 = arith.divf %131, %132 : vector<8x1xf32>
    %134 = vector.broadcast %126 : vector<8x1xf32> to vector<8x32xf32>
    %135 = arith.subf %121, %134 : vector<8x32xf32>
    %cst_52 = arith.constant 9.99999974E-6 : f32
    %136 = vector.broadcast %cst_52 : f32 to vector<8x1xf32>
    %137 = arith.addf %133, %136 : vector<8x1xf32>
    %138 = math.rsqrt %137 : vector<8x1xf32>
    %139 = vector.broadcast %138 : vector<8x1xf32> to vector<8x32xf32>
    %140 = arith.mulf %135, %139 : vector<8x32xf32>
    %141 = vector.broadcast %122 : vector<1x32xf32> to vector<8x32xf32>
    %142 = arith.mulf %140, %141 : vector<8x32xf32>
    %c0_53 = arith.constant 0 : index
    %c0_54 = arith.constant 0 : index
    %c0_55 = arith.constant 0 : index
    %143 = vector.load %arg9[%c0_53, %c0_54, %c0_55] : memref<1x8x32xf32, #tpu.memory_space<vmem>>, vector<1x8x32xf32>
    %144 = vector.shape_cast %143 : vector<1x8x32xf32> to vector<8x32xf32>
    %145 = vector.shape_cast %142 : vector<8x32xf32> to vector<1x8x32xf32>
    tpu.vector_store %arg9[%c0_53, %c0_54, %c0_55], %145 {strides = array<i32>} : memref<1x8x32xf32, #tpu.memory_space<vmem>>, vector<1x8x32xf32>,
    return
  }
  func.func @transform_0(%arg0: i32, %arg1: i32) -> (i32, i32, i32) {
    %c0_i32 = arith.constant 0 : i32
    %c0_i32_0 = arith.constant 0 : i32
    %c0_i32_1 = arith.constant 0 : i32
    return %arg0, %c0_i32, %c0_i32_0 : i32, i32, i32
  }
  func.func @transform_1(%arg0: i32, %arg1: i32) -> (i32, i32) {
    %c0_i32 = arith.constant 0 : i32
    %c0_i32_0 = arith.constant 0 : i32
    %c0_i32_1 = arith.constant 0 : i32
    return %c0_i32, %c0_i32_0 : i32, i32
  }
  func.func @transform_2(%arg0: i32, %arg1: i32) -> (i32, i32) {
    %c0_i32 = arith.constant 0 : i32
    %c0_i32_0 = arith.constant 0 : i32
    %c0_i32_1 = arith.constant 0 : i32
    return %c0_i32, %c0_i32_0 : i32, i32
  }
  func.func @transform_3(%arg0: i32, %arg1: i32) -> (i32, i32) {
    %c0_i32 = arith.constant 0 : i32
    %c0_i32_0 = arith.constant 0 : i32
    %c0_i32_1 = arith.constant 0 : i32
    return %c0_i32, %c0_i32_0 : i32, i32
  }
  func.func @transform_4(%arg0: i32, %arg1: i32) -> (i32, i32) {
    %c0_i32 = arith.constant 0 : i32
    %c0_i32_0 = arith.constant 0 : i32
    %c0_i32_1 = arith.constant 0 : i32
    return %c0_i32, %c0_i32_0 : i32, i32
  }
  func.func @transform_5(%arg0: i32, %arg1: i32) -> (i32, i32) {
    %c0_i32 = arith.constant 0 : i32
    %c0_i32_0 = arith.constant 0 : i32
    %c0_i32_1 = arith.constant 0 : i32
    return %c0_i32, %c0_i32_0 : i32, i32
  }
  func.func @transform_6(%arg0: i32, %arg1: i32) -> (i32, i32) {
    %c0_i32 = arith.constant 0 : i32
    %c0_i32_0 = arith.constant 0 : i32
    %c0_i32_1 = arith.constant 0 : i32
    return %c0_i32, %c0_i32_0 : i32, i32
  }
  func.func @transform_7(%arg0: i32, %arg1: i32) -> (i32, i32, i32) {
    %c0_i32 = arith.constant 0 : i32
    %c0_i32_0 = arith.constant 0 : i32
    return %arg0, %arg1, %c0_i32 : i32, i32, i32
  }
}

</mosaic_0001>

<llo_original>
// kernel: tpu_custom_call.1
$region0: #{tpu_custom_call.1}
  #allocation0 [shape = 'u32[]', space=smem, size = 0x4, offset = 0x4, fixed_abs, tag = 'smem constant byte address 0x4 - core index']
  #allocation1 [shape = 'u32[144,128]{1,0:T(1,128)}', space=vmem, size = 0x12000, scoped, tag = 'internal scratch']
  #allocation2 [shape = 'f32[8,64]{1,0:T(8,128)}', space=vmem, size = 0x1000, scoped, tag = 'scratch operand']
  %s0 = inlined_call_operand.vmem [shape: f32[2,16,32], index: 0, kind: input, shape index: {}]
  %s1 = inlined_call_operand.vmem [shape: f32[1,32], index: 1, kind: input, shape index: {}]
  %s2 = inlined_call_operand.vmem [shape: f32[32,64], index: 2, kind: input, shape index: {}]
  %s3 = inlined_call_operand.vmem [shape: f32[32,32], index: 3, kind: input, shape index: {}]
  %s4 = inlined_call_operand.vmem [shape: f32[2,16], index: 4, kind: input, shape index: {}]
  %s5 = inlined_call_operand.vmem [shape: f32[64,32], index: 5, kind: input, shape index: {}]
  %s6 = inlined_call_operand.vmem [shape: f32[1,32], index: 6, kind: input, shape index: {}]
  %s7 = inlined_call_operand.hbm [shape: f32[2,16,32], index: 7, kind: output, shape index: {}]
  %s8 = sld [smem:[#allocation0]]
  $region61: #{tpu_custom_call.1} parent=0
    _
  %s10 = ssub.s32 1, %s8
  %s11 = scalar_select 0, %s10, %s8
  $region1: #{tpu_custom_call.1} parent=0
    #allocation3 [shape = 'u8[8192]{0}', space=vmem, size = 0x2000, scoped, tag = 'output window, operand 0']
    #allocation4 [shape = 's32[2]{0}', space=sflag, size = 0x8, scoped, tag = 'scoped memory for tpu_custom_call.1']
    %12 = vsyncpa [#allocation4], 0
    %s13 = scalar_lea.sflag [#allocation4], 1
    %14 = vsyncpa %s13, 0
    loop: start=0, step=1, limit=6
    $region2: #{tpu_custom_call.1} parent=1 // loop_pre_header
      _
    $region3: #{tpu_custom_call.1} parent=1 // loop_header
      %s16 = sphi 0, %s20
      %p17 = scmp.ge.s32.totalorder %s16, 6
      %s23 = sphi 0, %s35
      %s24 = sphi 0, %s31
      %s25 = sphi 0, %s23
      %s26 = sphi 0, %s24
      %s27 = sphi 0, %s25
      %s28 = sphi 0, %s26
      %s38 = sphi 0, %s40
      %s41 = sphi 0, %s38
      %s42 = sphi 0, %s41
      %s58 = sphi 0, %s42
      %s62 = sphi 0, %s62
      %s64 = sphi 0, %s62
      %s65 = sphi 0, %s64
      %s79 = sphi 0, %s65
      %s83 = sphi 0, %s83
      %s85 = sphi 0, %s83
      %s86 = sphi 0, %s85
      %s100 = sphi 0, %s86
      %s104 = sphi 0, %s104
      %s106 = sphi 0, %s104
      %s107 = sphi 0, %s106
      %s121 = sphi 0, %s107
      %s125 = sphi 0, %s125
      %s127 = sphi 0, %s125
      %s128 = sphi 0, %s127
      %s142 = sphi 0, %s128
      %s146 = sphi 0, %s146
      %s148 = sphi 0, %s146
      %s149 = sphi 0, %s148
      %s163 = sphi 0, %s149
      %s167 = sphi 0, %s167
      %s169 = sphi 0, %s167
      %s170 = sphi 0, %s169
      %s184 = sphi 0, %s170
      %s192 = sphi 0, %s194
      %s195 = sphi 0, %s192
      %s196 = sphi 0, %s195
      %s212 = sphi 0, %s196
    $region4: #{tpu_custom_call.1} parent=1 // loop_header_branch
      %19 = sbr.rel (%p17) target = $region8
    $region5: #{tpu_custom_call.1} parent=1 // loop_body
      %s21 = ssub.s32 %s16, 1
      %s22 = ssub.s32 %s16, 2
      %s29 = sadd.s32 1, %s24
      %p30 = scmp.ge.s32.totalorder %s29, 2
      %s31 = scalar_select %p30, 0, %s29
      %s32 = sadd.s32 1, %s23
      %s33 = scalar_select %p30, %s32, %s23
      %p34 = scmp.ge.s32.totalorder %s33, 2
      %s35 = scalar_select %p34, 0, %s33
      %s36 = ssub.s32 %s23, %s35
      %p37 = scmp.eq.s32.totalorder %s36, 0
      %s39 = sadd.s32 %s38, 1
      %s40 = scalar_select %p37, %s38, %s39
      %p43 = pneg %p37
      %p44 = scmp.eq.s32.totalorder %s16, 3
      %p45 = por %p43, %p44
      %p46 = scmp.ne.s32.totalorder %s38, %s41
      %p47 = scmp.eq.s32.totalorder %s16, 0
      %p48 = por %p46, %p47
      %p49 = scmp.ne.s32.totalorder %s38, %s41
      %p50 = scmp.eq.s32.totalorder %s21, 3
      %p51 = por %p49, %p50
      %p52 = scmp.ne.s32.totalorder %s41, %s42
      %p53 = scmp.eq.s32.totalorder %s21, 0
      %p54 = por %p52, %p53
      %p55 = scmp.ne.s32.totalorder %s41, %s42
      %p56 = scmp.eq.s32.totalorder %s22, 3
      %p57 = por %p55, %p56
      %p59 = scmp.ne.s32.totalorder %s42, %s58
      %p60 = scmp.eq.s32.totalorder %s22, 0
      %p61 = por %p59, %p60
      %s63 = sadd.s32 %s62, 1
      %p66 = scmp.eq.s32.totalorder %s16, 3
      %p67 = scmp.ne.s32.totalorder %s62, %s64
      %p68 = scmp.eq.s32.totalorder %s16, 0
      %p69 = por %p67, %p68
      %p70 = scmp.ne.s32.totalorder %s62, %s64
      %p71 = scmp.eq.s32.totalorder %s21, 3
      %p72 = por %p70, %p71
      %p73 = scmp.ne.s32.totalorder %s64, %s65
      %p74 = scmp.eq.s32.totalorder %s21, 0
      %p75 = por %p73, %p74
      %p76 = scmp.ne.s32.totalorder %s64, %s65
      %p77 = scmp.eq.s32.totalorder %s22, 3
      %p78 = por %p76, %p77
      %p80 = scmp.ne.s32.totalorder %s65, %s79
      %p81 = scmp.eq.s32.totalorder %s22, 0
      %p82 = por %p80, %p81
      %s84 = sadd.s32 %s83, 1
      %p87 = scmp.eq.s32.totalorder %s16, 3
      %p88 = scmp.ne.s32.totalorder %s83, %s85
      %p89 = scmp.eq.s32.totalorder %s16, 0
      %p90 = por %p88, %p89
      %p91 = scmp.ne.s32.totalorder %s83, %s85
      %p92 = scmp.eq.s32.totalorder %s21, 3
      %p93 = por %p91, %p92
      %p94 = scmp.ne.s32.totalorder %s85, %s86
      %p95 = scmp.eq.s32.totalorder %s21, 0
      %p96 = por %p94, %p95
      %p97 = scmp.ne.s32.totalorder %s85, %s86
      %p98 = scmp.eq.s32.totalorder %s22, 3
      %p99 = por %p97, %p98
      %p101 = scmp.ne.s32.totalorder %s86, %s100
      %p102 = scmp.eq.s32.totalorder %s22, 0
      %p103 = por %p101, %p102
      %s105 = sadd.s32 %s104, 1
      %p108 = scmp.eq.s32.totalorder %s16, 3
      %p109 = scmp.ne.s32.totalorder %s104, %s106
      %p110 = scmp.eq.s32.totalorder %s16, 0
      %p111 = por %p109, %p110
      %p112 = scmp.ne.s32.totalorder %s104, %s106
      %p113 = scmp.eq.s32.totalorder %s21, 3
      %p114 = por %p112, %p113
      %p115 = scmp.ne.s32.totalorder %s106, %s107
      %p116 = scmp.eq.s32.totalorder %s21, 0
      %p117 = por %p115, %p116
      %p118 = scmp.ne.s32.totalorder %s106, %s107
      %p119 = scmp.eq.s32.totalorder %s22, 3
      %p120 = por %p118, %p119
      %p122 = scmp.ne.s32.totalorder %s107, %s121
      %p123 = scmp.eq.s32.totalorder %s22, 0
      %p124 = por %p122, %p123
      %s126 = sadd.s32 %s125, 1
      %p129 = scmp.eq.s32.totalorder %s16, 3
      %p130 = scmp.ne.s32.totalorder %s125, %s127
      %p131 = scmp.eq.s32.totalorder %s16, 0
      %p132 = por %p130, %p131
      %p133 = scmp.ne.s32.totalorder %s125, %s127
      %p134 = scmp.eq.s32.totalorder %s21, 3
      %p135 = por %p133, %p134
      %p136 = scmp.ne.s32.totalorder %s127, %s128
      %p137 = scmp.eq.s32.totalorder %s21, 0
      %p138 = por %p136, %p137
      %p139 = scmp.ne.s32.totalorder %s127, %s128
      %p140 = scmp.eq.s32.totalorder %s22, 3
      %p141 = por %p139, %p140
      %p143 = scmp.ne.s32.totalorder %s128, %s142
      %p144 = scmp.eq.s32.totalorder %s22, 0
      %p145 = por %p143, %p144
      %s147 = sadd.s32 %s146, 1
      %p150 = scmp.eq.s32.totalorder %s16, 3
      %p151 = scmp.ne.s32.totalorder %s146, %s148
      %p152 = scmp.eq.s32.totalorder %s16, 0
      %p153 = por %p151, %p152
      %p154 = scmp.ne.s32.totalorder %s146, %s148
      %p155 = scmp.eq.s32.totalorder %s21, 3
      %p156 = por %p154, %p155
      %p157 = scmp.ne.s32.totalorder %s148, %s149
      %p158 = scmp.eq.s32.totalorder %s21, 0
      %p159 = por %p157, %p158
      %p160 = scmp.ne.s32.totalorder %s148, %s149
      %p161 = scmp.eq.s32.totalorder %s22, 3
      %p162 = por %p160, %p161
      %p164 = scmp.ne.s32.totalorder %s149, %s163
      %p165 = scmp.eq.s32.totalorder %s22, 0
      %p166 = por %p164, %p165
      %s168 = sadd.s32 %s167, 1
      %p171 = scmp.eq.s32.totalorder %s16, 3
      %p172 = scmp.ne.s32.totalorder %s167, %s169
      %p173 = scmp.eq.s32.totalorder %s16, 0
      %p174 = por %p172, %p173
      %p175 = scmp.ne.s32.totalorder %s167, %s169
      %p176 = scmp.eq.s32.totalorder %s21, 3
      %p177 = por %p175, %p176
      %p178 = scmp.ne.s32.totalorder %s169, %s170
      %p179 = scmp.eq.s32.totalorder %s21, 0
      %p180 = por %p178, %p179
      %p181 = scmp.ne.s32.totalorder %s169, %s170
      %p182 = scmp.eq.s32.totalorder %s22, 3
      %p183 = por %p181, %p182
      %p185 = scmp.ne.s32.totalorder %s170, %s184
      %p186 = scmp.eq.s32.totalorder %s22, 0
      %p187 = por %p185, %p186
      %s188 = ssub.s32 %s23, %s35
      %s189 = ssub.s32 %s24, %s31
      %s190 = sor.u32 %s188, %s189
      %p191 = scmp.eq.s32.totalorder %s190, 0
      %s193 = sadd.s32 %s192, 1
      %s194 = scalar_select %p191, %s192, %s193
      %p197 = pneg %p191
      %p198 = scmp.eq.s32.totalorder %s16, 3
      %p199 = por %p197, %p198
      %p200 = scmp.ne.s32.totalorder %s192, %s195
      %p201 = scmp.eq.s32.totalorder %s16, 0
      %p202 = por %p200, %p201
      %p203 = scmp.ne.s32.totalorder %s192, %s195
      %p204 = scmp.eq.s32.totalorder %s21, 3
      %p205 = por %p203, %p204
      %p206 = scmp.ne.s32.totalorder %s195, %s196
      %p207 = scmp.eq.s32.totalorder %s21, 0
      %p208 = por %p206, %p207
      %p209 = scmp.ne.s32.totalorder %s195, %s196
      %p210 = scmp.eq.s32.totalorder %s22, 3
      %p211 = por %p209, %p210
      %p213 = scmp.ne.s32.totalorder %s196, %s212
      %p214 = scmp.eq.s32.totalorder %s22, 0
      %p215 = por %p213, %p214
      %p216 = scmp.le.s32.totalorder 1, %s16
      %p217 = scmp.lt.s32.totalorder %s16, 5
      %p218 = pnand %p216, %p217
      %p219 = pneg %p218
      // Predicated region
      $region9: #{tpu_custom_call.1} parent=5 // pred_check
        _
      $region10: #{tpu_custom_call.1} parent=5 // pred_check_branch
        %221 = sbr.rel (%p218) target = $region12
      $region11: #{tpu_custom_call.1} parent=5 // pred_region
        %s222 = ssub.s32 %s16, 1
        // Predicated region
        $region13: #{tpu_custom_call.1} parent=11 // pred_check
          %p223 = pneg %p75
        $region14: #{tpu_custom_call.1} parent=11 // pred_check_branch
          %225 = sbr.rel (%p223) target = $region16
        $region15: #{tpu_custom_call.1} parent=11 // pred_region
          _
        $region16: #{tpu_custom_call.1} parent=11 // pred_fallthru
          _
        // Predicated region
        $region17: #{tpu_custom_call.1} parent=11 // pred_check
          %p226 = pneg %p96
        $region18: #{tpu_custom_call.1} parent=11 // pred_check_branch
          %228 = sbr.rel (%p226) target = $region20
        $region19: #{tpu_custom_call.1} parent=11 // pred_region
          _
        $region20: #{tpu_custom_call.1} parent=11 // pred_fallthru
          _
        // Predicated region
        $region21: #{tpu_custom_call.1} parent=11 // pred_check
          %p229 = pneg %p117
        $region22: #{tpu_custom_call.1} parent=11 // pred_check_branch
          %231 = sbr.rel (%p229) target = $region24
        $region23: #{tpu_custom_call.1} parent=11 // pred_region
          _
        $region24: #{tpu_custom_call.1} parent=11 // pred_fallthru
          _
        // Predicated region
        $region25: #{tpu_custom_call.1} parent=11 // pred_check
          %p232 = pneg %p138
        $region26: #{tpu_custom_call.1} parent=11 // pred_check_branch
          %234 = sbr.rel (%p232) target = $region28
        $region27: #{tpu_custom_call.1} parent=11 // pred_region
          _
        $region28: #{tpu_custom_call.1} parent=11 // pred_fallthru
          _
        // Predicated region
        $region29: #{tpu_custom_call.1} parent=11 // pred_check
          %p235 = pneg %p159
        $region30: #{tpu_custom_call.1} parent=11 // pred_check_branch
          %237 = sbr.rel (%p235) target = $region32
        $region31: #{tpu_custom_call.1} parent=11 // pred_region
          _
        $region32: #{tpu_custom_call.1} parent=11 // pred_fallthru
          _
        // Predicated region
        $region33: #{tpu_custom_call.1} parent=11 // pred_check
          %p238 = pneg %p180
        $region34: #{tpu_custom_call.1} parent=11 // pred_check_branch
          %240 = sbr.rel (%p238) target = $region36
        $region35: #{tpu_custom_call.1} parent=11 // pred_region
          _
        $region36: #{tpu_custom_call.1} parent=11 // pred_fallthru
          _
      $region12: #{tpu_custom_call.1} parent=5 // pred_fallthru
        _
      %p241 = scmp.lt.s32.totalorder %s16, 4
      // Predicated region
      $region37: #{tpu_custom_call.1} parent=5 // pred_check
        %p242 = pneg %p241
      $region38: #{tpu_custom_call.1} parent=5 // pred_check_branch
        %244 = sbr.rel (%p242) target = $region40
      $region39: #{tpu_custom_call.1} parent=5 // pred_region
        // Predicated region
        $region41: #{tpu_custom_call.1} parent=39 // pred_check
          %p245 = pneg %p48
        $region42: #{tpu_custom_call.1} parent=39 // pred_check_branch
          %247 = sbr.rel (%p245) target = $region44
        $region43: #{tpu_custom_call.1} parent=39 // pred_region
          %p248 = scmp.lt.s32.totalorder %s23, 1
          %s249 = scalar_select %p248, %s23, 1
          %s250 = smul.addr %s249, 2
          %s251 = smul.addr %s250, 8
          %s252 = scalar_lea.vmem %s0, %s251
        $region44: #{tpu_custom_call.1} parent=39 // pred_fallthru
          _
      $region40: #{tpu_custom_call.1} parent=5 // pred_fallthru
        _
      %p253 = scmp.le.s32.totalorder 1, %s16
      %p254 = scmp.lt.s32.totalorder %s16, 5
      %p255 = pnand %p253, %p254
      %p256 = pneg %p255
      // Predicated region
      $region45: #{tpu_custom_call.1} parent=5 // pred_check
        _
      $region46: #{tpu_custom_call.1} parent=5 // pred_check_branch
        %258 = sbr.rel (%p255) target = $region48
      $region47: #{tpu_custom_call.1} parent=5 // pred_region
        %s259 = ssub.s32 %s16, 1
        %p260 = scmp.lt.s32.totalorder %s25, 1
        %s261 = scalar_select %p260, %s25, 1
        %s262 = smul.addr %s261, 2
        %s263 = smul.addr %s262, 8
        %s264 = scalar_lea.vmem %s0, %s263
        %p265 = pneg %p54
        %p266 = pneg %p51
        %p267 = pneg %p75
        %p268 = pneg %p72
        %p269 = pneg %p96
        %p270 = pneg %p93
        %p271 = pneg %p117
        %p272 = pneg %p114
        %p273 = pneg %p138
        %p274 = pneg %p135
        %p275 = pneg %p159
        %p276 = pneg %p156
        %p277 = pneg %p180
        %p278 = pneg %p177
        %p279 = pneg %p208
        %p280 = pneg %p205
        %s281 = sand.u32 %s195, 1
        %s282 = scalar_lea.sflag [#allocation4], %s281
        %s283 = sand.u32 %s195, 1
        %s284 = smul.addr %s283, 8
        %s285 = scalar_lea.vmem [#allocation3], %s284
        %p286 = scmp.lt.s32.totalorder %s25, 1
        %s287 = scalar_select %p286, %s25, 1
        %s288 = smul.addr %s287, 2
        %s289 = smul.addr %s288, 8
        %s290 = scalar_lea.vmem %s0, %s289
        %v291 = vld [vmem:[%s1] sm:$0x1]
        %v292 = vld [vmem:[%s290] sm:$0xff]
        %v293 = vld [vmem:[%s290 + $0x8] sm:$0xff]
        %vm294 = vcmask 261120
        %v295 = vsel %vm294, %v292, 0.0
        %296 = vadd.xlane.f32.xlu0 %v295
        %v297 = vpop.xlane.xlu0 %296
        %v298 = vsel %vm294, %v293, 0.0
        %299 = vadd.xlane.f32.xlu0 %v298
        %v300 = vpop.xlane.xlu0 %299
        %v301 = vrcp.pop 32.0
        %v302 = vmul.f32 %v297, %v301
        %v303 = vmul.f32 %v300, %v301
        %v304 = vsub.f32 %v292, %v302
        %v305 = vsub.f32 %v293, %v303
        %v306 = vmul.f32 %v304, %v304
        %v307 = vmul.f32 %v305, %v305
        %v308 = vsel %vm294, %v306, 0.0
        %309 = vadd.xlane.f32.xlu0 %v308
        %v310 = vpop.xlane.xlu0 %309
        %v311 = vsel %vm294, %v307, 0.0
        %312 = vadd.xlane.f32.xlu0 %v311
        %v313 = vpop.xlane.xlu0 %312
        %v314 = vmul.f32 %v310, %v301
        %v315 = vmul.f32 %v313, %v301
        %v316 = vadd.f32 %v314, 1e-05
        %v317 = vadd.f32 %v315, 1e-05
        %v318 = vrsqrt.pop %v316
        %v319 = vrsqrt.pop %v317
        %v320 = vmul.f32 %v304, %v318
        %v321 = vmul.f32 %v305, %v319
        %v323 = vlaneseq
        %v324 = vshrl.u32 %v323, 7
        %v325 = vsub.s32 0, %v324
        %v326 = vrot.slane %v291, %v325
        %v328 = vmul.f32 %v320, %v326
        %v329 = vmul.f32 %v321, %v326
        %v330 = vld [vmem:[%s3] sm:$0xff]
        %v331 = vld [vmem:[%s3 + $0x8] sm:$0xff]
        %v332 = vld [vmem:[%s3 + $0x10] sm:$0xff]
        %v333 = vld [vmem:[%s3 + $0x18] sm:$0xff]
        %v335 = vsel %vm294, %v328, 0
        %v338 = vsel %vm294, %v329, 0
        %340 = vmatprep.subr.mxu0 0.0
        %341 = vmatpush1.msra.mxu0 0.0
        %342 = vmatprep.subr.mxu0 0.0
        %343 = vmatpush1.msra.mxu0 0.0
        %344 = vmatprep.subr.mxu0 0.0
        %345 = vmatpush1.msra.mxu0 0.0
        %346 = vmatprep.subr.mxu0 0.0
        %347 = vmatpush1.msra.mxu0 0.0
        %348 = vmatprep.subr.mxu0 0.0
        %349 = vmatpush1.msra.mxu0 0.0
        %350 = vmatprep.subr.mxu0 0.0
        %351 = vmatpush1.msra.mxu0 0.0
        %352 = vmatprep.subr.mxu0 0.0
        %353 = vmatpush1.msra.mxu0 0.0
        %354 = vmatprep.subr.mxu0 0.0
        %355 = vmatpush1.msra.mxu0 0.0
        %356 = vmatprep.subr.mxu0 0.0
        %357 = vmatpush1.msra.mxu0 0.0
        %358 = vmatprep.subr.mxu0 0.0
        %359 = vmatpush1.msra.mxu0 0.0
        %360 = vmatprep.subr.mxu0 0.0
        %361 = vmatpush1.msra.mxu0 0.0
        %362 = vmatprep.subr.mxu0 0.0
        %363 = vmatpush1.msra.mxu0 0.0
        %364 = vmatprep.subr.mxu0 0.0
        %365 = vmatpush1.msra.mxu0 %v333
        %366 = vmatprep.subr.mxu0 0.0
        %367 = vmatpush1.msra.mxu0 %v332
        %368 = vmatprep.subr.mxu0 0.0
        %369 = vmatpush1.msra.mxu0 %v331
        %370 = vmatprep.subr.mxu0 0.0
        %371 = vmatpush1.msra.mxu0 %v330
        %372 = vmatprep.subr.mxu0 0.0
        %373 = vmatpush2.msra.mxu0 0.0
        %374 = vmatprep.subr.mxu0 0.0
        %375 = vmatpush2.msra.mxu0 0.0
        %376 = vmatprep.subr.mxu0 0.0
        %377 = vmatpush2.msra.mxu0 0.0
        %378 = vmatprep.subr.mxu0 0.0
        %379 = vmatpush2.msra.mxu0 0.0
        %380 = vmatprep.subr.mxu0 0.0
        %381 = vmatpush2.msra.mxu0 0.0
        %382 = vmatprep.subr.mxu0 0.0
        %383 = vmatpush2.msra.mxu0 0.0
        %384 = vmatprep.subr.mxu0 0.0
        %385 = vmatpush2.msra.mxu0 0.0
        %386 = vmatprep.subr.mxu0 0.0
        %387 = vmatpush2.msra.mxu0 0.0
        %388 = vmatprep.subr.mxu0 0.0
        %389 = vmatpush2.msra.mxu0 0.0
        %390 = vmatprep.subr.mxu0 0.0
        %391 = vmatpush2.msra.mxu0 0.0
        %392 = vmatprep.subr.mxu0 0.0
        %393 = vmatpush2.msra.mxu0 0.0
        %394 = vmatprep.subr.mxu0 0.0
        %395 = vmatpush2.msra.mxu0 0.0
        %396 = vmatprep.subr.mxu0 0.0
        %397 = vmatpush2.msra.mxu0 0.0
        %398 = vmatprep.subr.mxu0 0.0
        %399 = vmatpush2.msra.mxu0 0.0
        %400 = vmatprep.subr.mxu0 0.0
        %401 = vmatpush2.msra.mxu0 0.0
        %402 = vmatprep.subr.mxu0 0.0
        %403 = vmatpush2.msra.mxu0 0.0
        %404 = vmatprep.mubr.f32.mxu0 0.0
        %405 = vmatmul.mubr.f32.gmra.mxu0 %v335
        %v406 = vpop.f32.mrf.mxu0
        %v407 = vadd.f32 0.0, %v406
        %v408 = vpop.f32.mrf.mxu0
        %409 = vmatprep.mubr.f32.mxu0 0.0
        %410 = vmatmul.mubr.f32.gmra.mxu0 %v338
        %v411 = vpop.f32.mrf.mxu0
        %v412 = vadd.f32 0.0, %v411
        %v413 = vpop.f32.mrf.mxu0
        %414 = vdwg.mxu0
        %v415 = vld [vmem:[%s4] sm:$0x3]
        %v416 = vmul.f32 %v407, %v407
        %v417 = vmul.f32 %v412, %v412
        %vm418 = vcmask 130048
        %v419 = vsel %vm418, %v416, 0.0
        %420 = vadd.xlane.f32.xlu0 %v419
        %v421 = vpop.xlane.xlu0 %420
        %v422 = vsel %vm418, %v417, 0.0
        %423 = vadd.xlane.f32.xlu0 %v422
        %v424 = vpop.xlane.xlu0 %423
        %v425 = vmax.f32 %v421, 1e-24
        %v426 = vmax.f32 %v424, 1e-24
        %v427 = vrsqrt.pop %v425
        %v428 = vrsqrt.pop %v426
        %v429 = vmul.f32 %v407, %v427
        %v430 = vmul.f32 %v412, %v428
        %v431 = vmul.f32 %v429, 16.0
        %v432 = vmul.f32 %v430, 16.0
        %v433 = vmul.f32 %v415, %v415
        %vm434 = vcmask 122880
        %v435 = vsel %vm434, %v433, 0.0
        %436 = vadd.xlane.f32.xlu0 %v435
        %v437 = vpop.xlane.xlu0 %436
        %v438 = vmax.f32 %v437, 1e-24
        %v439 = vrsqrt.pop %v438
        %v440 = vmul.f32 %v415, %v439
        %v441 = vmul.f32 %v440, 16.0
        %s442 = smul.u32 %s26, 8
        %s443 = scalar_lea.vmem %s290, %s442
        %v444 = vld [vmem:[%s443] sm:$0xff]
        %v445 = vsel %vm294, %v444, 0.0
        %446 = vadd.xlane.f32.xlu0 %v445
        %v447 = vpop.xlane.xlu0 %446
        %v448 = vmul.f32 %v447, %v301
        %v449 = vsub.f32 %v444, %v448
        %v450 = vmul.f32 %v449, %v449
        %v451 = vsel %vm294, %v450, 0.0
        %452 = vadd.xlane.f32.xlu0 %v451
        %v453 = vpop.xlane.xlu0 %452
        %v454 = vmul.f32 %v453, %v301
        %v455 = vadd.f32 %v454, 1e-05
        %v456 = vrsqrt.pop %v455
        %v457 = vmul.f32 %v449, %v456
        %v458 = vmul.f32 %v457, %v326
        %v459 = vld [vmem:[%s2] sm:$0xff]
        %v460 = vld [vmem:[%s2 + $0x8] sm:$0xff]
        %v461 = vld [vmem:[%s2 + $0x10] sm:$0xff]
        %v462 = vld [vmem:[%s2 + $0x18] sm:$0xff]
        %v464 = vsel %vm294, %v458, 0
        %466 = vmatprep.subr.mxu0 0.0
        %467 = vmatpush1.msra.mxu0 0.0
        %468 = vmatprep.subr.mxu0 0.0
        %469 = vmatpush1.msra.mxu0 0.0
        %470 = vmatprep.subr.mxu0 0.0
        %471 = vmatpush1.msra.mxu0 0.0
        %472 = vmatprep.subr.mxu0 0.0
        %473 = vmatpush1.msra.mxu0 0.0
        %474 = vmatprep.subr.mxu0 0.0
        %475 = vmatpush1.msra.mxu0 0.0
        %476 = vmatprep.subr.mxu0 0.0
        %477 = vmatpush1.msra.mxu0 0.0
        %478 = vmatprep.subr.mxu0 0.0
        %479 = vmatpush1.msra.mxu0 0.0
        %480 = vmatprep.subr.mxu0 0.0
        %481 = vmatpush1.msra.mxu0 0.0
        %482 = vmatprep.subr.mxu0 0.0
        %483 = vmatpush1.msra.mxu0 0.0
        %484 = vmatprep.subr.mxu0 0.0
        %485 = vmatpush1.msra.mxu0 0.0
        %486 = vmatprep.subr.mxu0 0.0
        %487 = vmatpush1.msra.mxu0 0.0
        %488 = vmatprep.subr.mxu0 0.0
        %489 = vmatpush1.msra.mxu0 0.0
        %490 = vmatprep.subr.mxu0 0.0
        %491 = vmatpush1.msra.mxu0 %v462
        %492 = vmatprep.subr.mxu0 0.0
        %493 = vmatpush1.msra.mxu0 %v461
        %494 = vmatprep.subr.mxu0 0.0
        %495 = vmatpush1.msra.mxu0 %v460
        %496 = vmatprep.subr.mxu0 0.0
        %497 = vmatpush1.msra.mxu0 %v459
        %498 = vmatprep.subr.mxu0 0.0
        %499 = vmatpush2.msra.mxu0 0.0
        %500 = vmatprep.subr.mxu0 0.0
        %501 = vmatpush2.msra.mxu0 0.0
        %502 = vmatprep.subr.mxu0 0.0
        %503 = vmatpush2.msra.mxu0 0.0
        %504 = vmatprep.subr.mxu0 0.0
        %505 = vmatpush2.msra.mxu0 0.0
        %506 = vmatprep.subr.mxu0 0.0
        %507 = vmatpush2.msra.mxu0 0.0
        %508 = vmatprep.subr.mxu0 0.0
        %509 = vmatpush2.msra.mxu0 0.0
        %510 = vmatprep.subr.mxu0 0.0
        %511 = vmatpush2.msra.mxu0 0.0
        %512 = vmatprep.subr.mxu0 0.0
        %513 = vmatpush2.msra.mxu0 0.0
        %514 = vmatprep.subr.mxu0 0.0
        %515 = vmatpush2.msra.mxu0 0.0
        %516 = vmatprep.subr.mxu0 0.0
        %517 = vmatpush2.msra.mxu0 0.0
        %518 = vmatprep.subr.mxu0 0.0
        %519 = vmatpush2.msra.mxu0 0.0
        %520 = vmatprep.subr.mxu0 0.0
        %521 = vmatpush2.msra.mxu0 0.0
        %522 = vmatprep.subr.mxu0 0.0
        %523 = vmatpush2.msra.mxu0 0.0
        %524 = vmatprep.subr.mxu0 0.0
        %525 = vmatpush2.msra.mxu0 0.0
        %526 = vmatprep.subr.mxu0 0.0
        %527 = vmatpush2.msra.mxu0 0.0
        %528 = vmatprep.subr.mxu0 0.0
        %529 = vmatpush2.msra.mxu0 0.0
        %530 = vmatprep.mubr.f32.mxu0 0.0
        %531 = vmatmul.mubr.f32.gmra.mxu0 %v464
        %v532 = vpop.f32.mrf.mxu0
        %v533 = vadd.f32 0.0, %v532
        %v534 = vpop.f32.mrf.mxu0
        %535 = vdwg.mxu0
        %537 = vrot.lane.b32.xlu0 %v533, 112
        %v538 = vpop.permute.xlu0 %537
        %540 = vrot.lane.b32.xlu0 %v533, 96
        %v541 = vpop.permute.xlu0 %540
        %543 = vrot.lane.b32.xlu0 %v533, 80
        %v544 = vpop.permute.xlu0 %543
        %v546 = vmul.f32 %v533, %v533
        %v547 = vmul.f32 %v538, %v538
        %v548 = vmul.f32 %v541, %v541
        %v549 = vmul.f32 %v544, %v544
        %v550 = vsel %vm418, %v546, 0.0
        %551 = vadd.xlane.f32.xlu0 %v550
        %v552 = vpop.xlane.xlu0 %551
        %v553 = vsel %vm418, %v547, 0.0
        %554 = vadd.xlane.f32.xlu0 %v553
        %v555 = vpop.xlane.xlu0 %554
        %v556 = vsel %vm418, %v548, 0.0
        %557 = vadd.xlane.f32.xlu0 %v556
        %v558 = vpop.xlane.xlu0 %557
        %v559 = vsel %vm418, %v549, 0.0
        %560 = vadd.xlane.f32.xlu0 %v559
        %v561 = vpop.xlane.xlu0 %560
        %v562 = vmax.f32 %v552, 1e-24
        %v563 = vmax.f32 %v555, 1e-24
        %v564 = vmax.f32 %v558, 1e-24
        %v565 = vmax.f32 %v561, 1e-24
        %v566 = vrsqrt.pop %v562
        %v567 = vrsqrt.pop %v563
        %v568 = vrsqrt.pop %v564
        %v569 = vrsqrt.pop %v565
        %v570 = vmul.f32 %v533, %v566
        %v571 = vmul.f32 %v538, %v567
        %v572 = vmul.f32 %v541, %v568
        %v573 = vmul.f32 %v544, %v569
        %v575 = vsel %vm418, %v570, 0
        %v578 = vsel %vm418, %v571, 0
        %v581 = vsel %vm418, %v572, 0
        %v584 = vsel %vm418, %v573, 0
        %v587 = vsel %vm418, %v431, 0
        %v590 = vsel %vm418, %v432, 0
        %592 = vmatprep.subr.mxu0 0.0
        %593 = vmatpush1.xpose.msra.mxu0 0.0
        %594 = vmatprep.subr.mxu0 0.0
        %595 = vmatpush1.xpose.msra.mxu0 0.0
        %596 = vmatprep.subr.mxu0 0.0
        %597 = vmatpush1.xpose.msra.mxu0 0.0
        %598 = vmatprep.subr.mxu0 0.0
        %599 = vmatpush1.xpose.msra.mxu0 0.0
        %600 = vmatprep.subr.mxu0 0.0
        %601 = vmatpush1.xpose.msra.mxu0 0.0
        %602 = vmatprep.subr.mxu0 0.0
        %603 = vmatpush1.xpose.msra.mxu0 0.0
        %604 = vmatprep.subr.mxu0 0.0
        %605 = vmatpush1.xpose.msra.mxu0 0.0
        %606 = vmatprep.subr.mxu0 0.0
        %607 = vmatpush1.xpose.msra.mxu0 0.0
        %608 = vmatprep.subr.mxu0 0.0
        %609 = vmatpush1.xpose.msra.mxu0 0.0
        %610 = vmatprep.subr.mxu0 0.0
        %611 = vmatpush1.xpose.msra.mxu0 0.0
        %612 = vmatprep.subr.mxu0 0.0
        %613 = vmatpush1.xpose.msra.mxu0 0.0
        %614 = vmatprep.subr.mxu0 0.0
        %615 = vmatpush1.xpose.msra.mxu0 0.0
        %616 = vmatprep.subr.mxu0 0.0
        %617 = vmatpush1.xpose.msra.mxu0 0.0
        %618 = vmatprep.subr.mxu0 0.0
        %619 = vmatpush1.xpose.msra.mxu0 0.0
        %620 = vmatprep.subr.mxu0 0.0
        %621 = vmatpush1.xpose.msra.mxu0 %v590
        %622 = vmatprep.subr.mxu0 0.0
        %623 = vmatpush1.xpose.msra.mxu0 %v587
        %624 = vmatprep.subr.mxu0 0.0
        %625 = vmatpush2.xpose.msra.mxu0 0.0
        %626 = vmatprep.subr.mxu0 0.0
        %627 = vmatpush2.xpose.msra.mxu0 0.0
        %628 = vmatprep.subr.mxu0 0.0
        %629 = vmatpush2.xpose.msra.mxu0 0.0
        %630 = vmatprep.subr.mxu0 0.0
        %631 = vmatpush2.xpose.msra.mxu0 0.0
        %632 = vmatprep.subr.mxu0 0.0
        %633 = vmatpush2.xpose.msra.mxu0 0.0
        %634 = vmatprep.subr.mxu0 0.0
        %635 = vmatpush2.xpose.msra.mxu0 0.0
        %636 = vmatprep.subr.mxu0 0.0
        %637 = vmatpush2.xpose.msra.mxu0 0.0
        %638 = vmatprep.subr.mxu0 0.0
        %639 = vmatpush2.xpose.msra.mxu0 0.0
        %640 = vmatprep.subr.mxu0 0.0
        %641 = vmatpush2.xpose.msra.mxu0 0.0
        %642 = vmatprep.subr.mxu0 0.0
        %643 = vmatpush2.xpose.msra.mxu0 0.0
        %644 = vmatprep.subr.mxu0 0.0
        %645 = vmatpush2.xpose.msra.mxu0 0.0
        %646 = vmatprep.subr.mxu0 0.0
        %647 = vmatpush2.xpose.msra.mxu0 0.0
        %648 = vmatprep.subr.mxu0 0.0
        %649 = vmatpush2.xpose.msra.mxu0 0.0
        %650 = vmatprep.subr.mxu0 0.0
        %651 = vmatpush2.xpose.msra.mxu0 0.0
        %652 = vmatprep.subr.mxu0 0.0
        %653 = vmatpush2.xpose.msra.mxu0 0.0
        %654 = vmatprep.subr.mxu0 0.0
        %655 = vmatpush2.xpose.msra.mxu0 0.0
        %656 = vmatprep.mubr.f32.mxu0 0.0
        %657 = vmatmul.mubr.f32.gmra.mxu0 %v575
        %v658 = vpop.f32.mrf.mxu0
        %v659 = vadd.f32 0.0, %v658
        %v660 = vpop.f32.mrf.mxu0
        %661 = vmatprep.mubr.f32.mxu0 0.0
        %662 = vmatmul.mubr.f32.gmra.mxu0 %v578
        %v663 = vpop.f32.mrf.mxu0
        %v664 = vadd.f32 0.0, %v663
        %v665 = vpop.f32.mrf.mxu0
        %666 = vmatprep.mubr.f32.mxu0 0.0
        %667 = vmatmul.mubr.f32.gmra.mxu0 %v581
        %v668 = vpop.f32.mrf.mxu0
        %v669 = vadd.f32 0.0, %v668
        %v670 = vpop.f32.mrf.mxu0
        %671 = vmatprep.mubr.f32.mxu0 0.0
        %672 = vmatmul.mubr.f32.gmra.mxu0 %v584
        %v673 = vpop.f32.mrf.mxu0
        %v674 = vadd.f32 0.0, %v673
        %v675 = vpop.f32.mrf.mxu0
        %676 = vdwg.mxu0
        %v677 = vlaneseq
        %v678 = vshrl.u32 %v677, 7
        %v679 = vsub.s32 0, %v678
        %v680 = vrot.slane %v441, %v679
        %v681 = vmul.f32 %v570, %v680
        %v682 = vmul.f32 %v571, %v680
        %v683 = vmul.f32 %v572, %v680
        %v684 = vmul.f32 %v573, %v680
        %v685 = vsel %vm418, %v681, 0.0
        %686 = vadd.xlane.f32.xlu0 %v685
        %v687 = vpop.xlane.xlu0 %686
        %v688 = vsel %vm418, %v682, 0.0
        %689 = vadd.xlane.f32.xlu0 %v688
        %v690 = vpop.xlane.xlu0 %689
        %v691 = vsel %vm418, %v683, 0.0
        %692 = vadd.xlane.f32.xlu0 %v691
        %v693 = vpop.xlane.xlu0 %692
        %v694 = vsel %vm418, %v684, 0.0
        %695 = vadd.xlane.f32.xlu0 %v694
        %v696 = vpop.xlane.xlu0 %695
        %v697 = vsel %vm418, %v659, -inf
        %698 = vmax.xlane.f32.xlu0 %v697
        %v699 = vpop.xlane.xlu0 %698
        %v700 = vsel %vm418, %v664, -inf
        %701 = vmax.xlane.f32.xlu0 %v700
        %v702 = vpop.xlane.xlu0 %701
        %v703 = vsel %vm418, %v669, -inf
        %704 = vmax.xlane.f32.xlu0 %v703
        %v705 = vpop.xlane.xlu0 %704
        %v706 = vsel %vm418, %v674, -inf
        %707 = vmax.xlane.f32.xlu0 %v706
        %v708 = vpop.xlane.xlu0 %707
        %v709 = vmax.f32 %v699, %v687
        %v710 = vmax.f32 %v702, %v690
        %v711 = vmax.f32 %v705, %v693
        %v712 = vmax.f32 %v708, %v696
        %v713 = vsub.f32 %v659, %v709
        %v714 = vsub.f32 %v664, %v710
        %v715 = vsub.f32 %v669, %v711
        %v716 = vsub.f32 %v674, %v712
        %v717 = vmul.f32 %v713, 1.442695
        %v718 = vpow.pop %v717
        %v719 = vmul.f32 %v714, 1.442695
        %v720 = vpow.pop %v719
        %v721 = vmul.f32 %v715, 1.442695
        %v722 = vpow.pop %v721
        %v723 = vmul.f32 %v716, 1.442695
        %v724 = vpow.pop %v723
        %v725 = vsub.f32 %v687, %v709
        %v726 = vsub.f32 %v690, %v710
        %v727 = vsub.f32 %v693, %v711
        %v728 = vsub.f32 %v696, %v712
        %v729 = vmul.f32 %v725, 1.442695
        %v730 = vpow.pop %v729
        %v731 = vmul.f32 %v726, 1.442695
        %v732 = vpow.pop %v731
        %v733 = vmul.f32 %v727, 1.442695
        %v734 = vpow.pop %v733
        %v735 = vmul.f32 %v728, 1.442695
        %v736 = vpow.pop %v735
        %v737 = vsel %vm418, %v718, 0.0
        %738 = vadd.xlane.f32.xlu0 %v737
        %v739 = vpop.xlane.xlu0 %738
        %v740 = vsel %vm418, %v720, 0.0
        %741 = vadd.xlane.f32.xlu0 %v740
        %v742 = vpop.xlane.xlu0 %741
        %v743 = vsel %vm418, %v722, 0.0
        %744 = vadd.xlane.f32.xlu0 %v743
        %v745 = vpop.xlane.xlu0 %744
        %v746 = vsel %vm418, %v724, 0.0
        %747 = vadd.xlane.f32.xlu0 %v746
        %v748 = vpop.xlane.xlu0 %747
        %v749 = vadd.f32 %v739, %v730
        %v750 = vadd.f32 %v742, %v732
        %v751 = vadd.f32 %v745, %v734
        %v752 = vadd.f32 %v748, %v736
        %v753 = vlaneseq
        %v754 = vshrl.u32 %v753, 7
        %v755 = vsub.s32 1, %v754
        %v756 = vrot.slane %v415, %v755
        %v757 = vmul.f32 %v730, %v756
        %v758 = vmul.f32 %v732, %v756
        %v759 = vmul.f32 %v734, %v756
        %v760 = vmul.f32 %v736, %v756
        %763 = vrot.lane.b32.xlu0 %v407, 112
        %v764 = vpop.permute.xlu0 %763
        %765 = vrot.lane.b32.xlu0 %v412, 112
        %v766 = vpop.permute.xlu0 %765
        %v770 = vsel %vm418, %v718, 0
        %v773 = vsel %vm418, %v720, 0
        %v776 = vsel %vm418, %v722, 0
        %v779 = vsel %vm418, %v724, 0
        %781 = vmatprep.subr.mxu0 0.0
        %782 = vmatpush1.msra.mxu0 0.0
        %783 = vmatprep.subr.mxu0 0.0
        %784 = vmatpush1.msra.mxu0 0.0
        %785 = vmatprep.subr.mxu0 0.0
        %786 = vmatpush1.msra.mxu0 0.0
        %787 = vmatprep.subr.mxu0 0.0
        %788 = vmatpush1.msra.mxu0 0.0
        %789 = vmatprep.subr.mxu0 0.0
        %790 = vmatpush1.msra.mxu0 0.0
        %791 = vmatprep.subr.mxu0 0.0
        %792 = vmatpush1.msra.mxu0 0.0
        %793 = vmatprep.subr.mxu0 0.0
        %794 = vmatpush1.msra.mxu0 0.0
        %795 = vmatprep.subr.mxu0 0.0
        %796 = vmatpush1.msra.mxu0 0.0
        %797 = vmatprep.subr.mxu0 0.0
        %798 = vmatpush1.msra.mxu0 0.0
        %799 = vmatprep.subr.mxu0 0.0
        %800 = vmatpush1.msra.mxu0 0.0
        %801 = vmatprep.subr.mxu0 0.0
        %802 = vmatpush1.msra.mxu0 0.0
        %803 = vmatprep.subr.mxu0 0.0
        %804 = vmatpush1.msra.mxu0 0.0
        %805 = vmatprep.subr.mxu0 0.0
        %806 = vmatpush1.msra.mxu0 0.0
        %807 = vmatprep.subr.mxu0 0.0
        %808 = vmatpush1.msra.mxu0 0.0
        %809 = vmatprep.subr.mxu0 0.0
        %810 = vmatpush1.msra.mxu0 %v766
        %811 = vmatprep.subr.mxu0 0.0
        %812 = vmatpush1.msra.mxu0 %v764
        %813 = vmatprep.subr.mxu0 0.0
        %814 = vmatpush2.msra.mxu0 0.0
        %815 = vmatprep.subr.mxu0 0.0
        %816 = vmatpush2.msra.mxu0 0.0
        %817 = vmatprep.subr.mxu0 0.0
        %818 = vmatpush2.msra.mxu0 0.0
        %819 = vmatprep.subr.mxu0 0.0
        %820 = vmatpush2.msra.mxu0 0.0
        %821 = vmatprep.subr.mxu0 0.0
        %822 = vmatpush2.msra.mxu0 0.0
        %823 = vmatprep.subr.mxu0 0.0
        %824 = vmatpush2.msra.mxu0 0.0
        %825 = vmatprep.subr.mxu0 0.0
        %826 = vmatpush2.msra.mxu0 0.0
        %827 = vmatprep.subr.mxu0 0.0
        %828 = vmatpush2.msra.mxu0 0.0
        %829 = vmatprep.subr.mxu0 0.0
        %830 = vmatpush2.msra.mxu0 0.0
        %831 = vmatprep.subr.mxu0 0.0
        %832 = vmatpush2.msra.mxu0 0.0
        %833 = vmatprep.subr.mxu0 0.0
        %834 = vmatpush2.msra.mxu0 0.0
        %835 = vmatprep.subr.mxu0 0.0
        %836 = vmatpush2.msra.mxu0 0.0
        %837 = vmatprep.subr.mxu0 0.0
        %838 = vmatpush2.msra.mxu0 0.0
        %839 = vmatprep.subr.mxu0 0.0
        %840 = vmatpush2.msra.mxu0 0.0
        %841 = vmatprep.subr.mxu0 0.0
        %842 = vmatpush2.msra.mxu0 0.0
        %843 = vmatprep.subr.mxu0 0.0
        %844 = vmatpush2.msra.mxu0 0.0
        %845 = vmatprep.mubr.f32.mxu0 0.0
        %846 = vmatmul.mubr.f32.gmra.mxu0 %v770
        %v847 = vpop.f32.mrf.mxu0
        %v848 = vadd.f32 %v757, %v847
        %v849 = vpop.f32.mrf.mxu0
        %850 = vmatprep.mubr.f32.mxu0 0.0
        %851 = vmatmul.mubr.f32.gmra.mxu0 %v773
        %v852 = vpop.f32.mrf.mxu0
        %v853 = vadd.f32 %v758, %v852
        %v854 = vpop.f32.mrf.mxu0
        %855 = vmatprep.mubr.f32.mxu0 0.0
        %856 = vmatmul.mubr.f32.gmra.mxu0 %v776
        %v857 = vpop.f32.mrf.mxu0
        %v858 = vadd.f32 %v759, %v857
        %v859 = vpop.f32.mrf.mxu0
        %860 = vmatprep.mubr.f32.mxu0 0.0
        %861 = vmatmul.mubr.f32.gmra.mxu0 %v779
        %v862 = vpop.f32.mrf.mxu0
        %v863 = vadd.f32 %v760, %v862
        %v864 = vpop.f32.mrf.mxu0
        %865 = vdwg.mxu0
        %v866 = vrcp.pop %v749
        %v867 = vrcp.pop %v750
        %v868 = vrcp.pop %v751
        %v869 = vrcp.pop %v752
        %v870 = vmul.f32 %v848, %v866
        %v871 = vmul.f32 %v853, %v867
        %v872 = vmul.f32 %v858, %v868
        %v873 = vmul.f32 %v863, %v869
        %874 = vst.msk [vmem:[#allocation2] sm:$0xff] %vm418, %v870
        %876 = vrot.lane.b32.xlu0 %v871, 16
        %v877 = vpop.permute.xlu0 %876
        %vm879 = vcmask 261248
        %880 = vst.msk [vmem:[#allocation2] sm:$0xff] %vm879, %v877
        %882 = vrot.lane.b32.xlu0 %v872, 32
        %v883 = vpop.permute.xlu0 %882
        %vm885 = vcmask 392448
        %886 = vst.msk [vmem:[#allocation2] sm:$0xff] %vm885, %v883
        %888 = vrot.lane.b32.xlu0 %v873, 48
        %v889 = vpop.permute.xlu0 %888
        %vm891 = vcmask 523648
        %892 = vst.msk [vmem:[#allocation2] sm:$0xff] %vm891, %v889
        %v893 = vld [vmem:[#allocation2] sm:$0xff]
        %v894 = vld [vmem:[%s5] sm:$0xff]
        %v895 = vld [vmem:[%s5 + $0x8] sm:$0xff]
        %v896 = vld [vmem:[%s5 + $0x10] sm:$0xff]
        %v897 = vld [vmem:[%s5 + $0x18] sm:$0xff]
        %v898 = vld [vmem:[%s5 + $0x20] sm:$0xff]
        %v899 = vld [vmem:[%s5 + $0x28] sm:$0xff]
        %v900 = vld [vmem:[%s5 + $0x30] sm:$0xff]
        %v901 = vld [vmem:[%s5 + $0x38] sm:$0xff]
        %vm902 = vcmask 523264
        %v904 = vsel %vm902, %v893, 0
        %906 = vmatprep.subr.mxu0 0.0
        %907 = vmatpush1.msra.mxu0 0.0
        %908 = vmatprep.subr.mxu0 0.0
        %909 = vmatpush1.msra.mxu0 0.0
        %910 = vmatprep.subr.mxu0 0.0
        %911 = vmatpush1.msra.mxu0 0.0
        %912 = vmatprep.subr.mxu0 0.0
        %913 = vmatpush1.msra.mxu0 0.0
        %914 = vmatprep.subr.mxu0 0.0
        %915 = vmatpush1.msra.mxu0 0.0
        %916 = vmatprep.subr.mxu0 0.0
        %917 = vmatpush1.msra.mxu0 0.0
        %918 = vmatprep.subr.mxu0 0.0
        %919 = vmatpush1.msra.mxu0 0.0
        %920 = vmatprep.subr.mxu0 0.0
        %921 = vmatpush1.msra.mxu0 0.0
        %922 = vmatprep.subr.mxu0 0.0
        %923 = vmatpush1.msra.mxu0 %v901
        %924 = vmatprep.subr.mxu0 0.0
        %925 = vmatpush1.msra.mxu0 %v900
        %926 = vmatprep.subr.mxu0 0.0
        %927 = vmatpush1.msra.mxu0 %v899
        %928 = vmatprep.subr.mxu0 0.0
        %929 = vmatpush1.msra.mxu0 %v898
        %930 = vmatprep.subr.mxu0 0.0
        %931 = vmatpush1.msra.mxu0 %v897
        %932 = vmatprep.subr.mxu0 0.0
        %933 = vmatpush1.msra.mxu0 %v896
        %934 = vmatprep.subr.mxu0 0.0
        %935 = vmatpush1.msra.mxu0 %v895
        %936 = vmatprep.subr.mxu0 0.0
        %937 = vmatpush1.msra.mxu0 %v894
        %938 = vmatprep.subr.mxu0 0.0
        %939 = vmatpush2.msra.mxu0 0.0
        %940 = vmatprep.subr.mxu0 0.0
        %941 = vmatpush2.msra.mxu0 0.0
        %942 = vmatprep.subr.mxu0 0.0
        %943 = vmatpush2.msra.mxu0 0.0
        %944 = vmatprep.subr.mxu0 0.0
        %945 = vmatpush2.msra.mxu0 0.0
        %946 = vmatprep.subr.mxu0 0.0
        %947 = vmatpush2.msra.mxu0 0.0
        %948 = vmatprep.subr.mxu0 0.0
        %949 = vmatpush2.msra.mxu0 0.0
        %950 = vmatprep.subr.mxu0 0.0
        %951 = vmatpush2.msra.mxu0 0.0
        %952 = vmatprep.subr.mxu0 0.0
        %953 = vmatpush2.msra.mxu0 0.0
        %954 = vmatprep.subr.mxu0 0.0
        %955 = vmatpush2.msra.mxu0 0.0
        %956 = vmatprep.subr.mxu0 0.0
        %957 = vmatpush2.msra.mxu0 0.0
        %958 = vmatprep.subr.mxu0 0.0
        %959 = vmatpush2.msra.mxu0 0.0
        %960 = vmatprep.subr.mxu0 0.0
        %961 = vmatpush2.msra.mxu0 0.0
        %962 = vmatprep.subr.mxu0 0.0
        %963 = vmatpush2.msra.mxu0 0.0
        %964 = vmatprep.subr.mxu0 0.0
        %965 = vmatpush2.msra.mxu0 0.0
        %966 = vmatprep.subr.mxu0 0.0
        %967 = vmatpush2.msra.mxu0 0.0
        %968 = vmatprep.subr.mxu0 0.0
        %969 = vmatpush2.msra.mxu0 0.0
        %970 = vmatprep.mubr.f32.mxu0 0.0
        %971 = vmatmul.mubr.f32.gmra.mxu0 %v904
        %v972 = vpop.f32.mrf.mxu0
        %v973 = vadd.f32 0.0, %v972
        %v974 = vpop.f32.mrf.mxu0
        %975 = vdwg.mxu0
        %v976 = vld [vmem:[%s6] sm:$0x1]
        %v977 = vsel %vm294, %v973, 0.0
        %978 = vadd.xlane.f32.xlu0 %v977
        %v979 = vpop.xlane.xlu0 %978
        %v980 = vmul.f32 %v979, %v301
        %v981 = vsub.f32 %v973, %v980
        %v982 = vmul.f32 %v981, %v981
        %v983 = vsel %vm294, %v982, 0.0
        %984 = vadd.xlane.f32.xlu0 %v983
        %v985 = vpop.xlane.xlu0 %984
        %v986 = vmul.f32 %v985, %v301
        %v987 = vadd.f32 %v986, 1e-05
        %v988 = vrsqrt.pop %v987
        %v989 = vmul.f32 %v981, %v988
        %v991 = vlaneseq
        %v992 = vshrl.u32 %v991, 7
        %v993 = vsub.s32 0, %v992
        %v994 = vrot.slane %v976, %v993
        %v996 = vmul.f32 %v989, %v994
        %997 = vst.msk [vmem:[%s285] sm:$0xff] %vm294, %v996
        %s998 = sand.u32 %s195, 1
        %s999 = scalar_lea.sflag [#allocation4], %s998
        %s1000 = sand.u32 %s195, 1
        %s1001 = smul.addr %s1000, 8
        %s1002 = scalar_lea.vmem [#allocation3], %s1001
        // Predicated region
        $region49: #{tpu_custom_call.1} parent=47 // pred_check
          %p1003 = pneg %p205
        $region50: #{tpu_custom_call.1} parent=47 // pred_check_branch
          %1005 = sbr.rel (%p1003) target = $region52
        $region51: #{tpu_custom_call.1} parent=47 // pred_region
          %s1007 = ssub.s32 128, 128
          %1008 = vsyncadd %s999, %s1007
          %s1009 = smul.addr %s25, 2
          %s1010 = sadd.s32 %s26, %s1009
          %s1011 = smul.addr %s1010, 128
          %s1012 = scalar_lea.hbm %s7, %s1011
          %s1014 = sshll.u32 %s1002, 4
          %s1015 = int_to_ptr.vmem [resolvable:$true] %s1014
          %1017 = dma.vmem_to_hbm [thread:$0]  %s1015, 128, %s1012, %s999
        $region52: #{tpu_custom_call.1} parent=47 // pred_fallthru
          _
      $region48: #{tpu_custom_call.1} parent=5 // pred_fallthru
        _
      %p1018 = scmp.le.s32.totalorder 2, %s16
      // Predicated region
      $region53: #{tpu_custom_call.1} parent=5 // pred_check
        %p1019 = pneg %p1018
      $region54: #{tpu_custom_call.1} parent=5 // pred_check_branch
        %1021 = sbr.rel (%p1019) target = $region56
      $region55: #{tpu_custom_call.1} parent=5 // pred_region
        %s1022 = ssub.s32 %s16, 2
        // Predicated region
        $region57: #{tpu_custom_call.1} parent=55 // pred_check
          %p1023 = pneg %p211
        $region58: #{tpu_custom_call.1} parent=55 // pred_check_branch
          %1025 = sbr.rel (%p1023) target = $region60
        $region59: #{tpu_custom_call.1} parent=55 // pred_region
          %s1026 = sand.u32 %s196, 1
          %s1027 = scalar_lea.sflag [#allocation4], %s1026
          %s1028 = sand.u32 %s196, 1
          %s1029 = smul.addr %s1028, 8
          %s1030 = scalar_lea.vmem [#allocation3], %s1029
          %1031 = dma.done %s1027, 128
        $region60: #{tpu_custom_call.1} parent=55 // pred_fallthru
          _
      $region56: #{tpu_custom_call.1} parent=5 // pred_fallthru
        _
    $region6: #{tpu_custom_call.1} parent=1 // loop_footer
      %s20 = sadd.s32 1, %s16
    $region7: #{tpu_custom_call.1} parent=1 // loop_footer_branch
      %15 = sbr.rel target = $region3
    $region8: #{tpu_custom_call.1} parent=1 // loop_exit
      _
    %1032 = vsyncpa [#allocation4], 1
    %s1033 = scalar_lea.sflag [#allocation4], 1
    %1034 = vsyncpa %s1033, 1

</llo_original>
